<compile_context>
chip_gen: v6e
topology: v6e:2x2x1
jax: 0.10.0
libtpu: 0.0.40
codegen_flags: <defaults>
</compile_context>

<pallas_src>
import jax
import jax.numpy as jnp
from jax.experimental import pallas as pl
from jax.experimental.pallas import tpu as pltpu

BN_EPS = 1e-5
LANE = 128


def _round_up(x, m):
    return (x + m - 1) // m * m


def _make_classifier_kernel(n_sensors):
    """Build the classifier kernel for a fixed number of sensor inputs."""

    def kernel(*refs):
        x_refs = refs[:n_sensors]
        w1_refs = refs[n_sensors:2 * n_sensors]
        b1_ref, w2_ref, b2_ref, w3_ref, b3_ref, o_ref = refs[2 * n_sensors:]

        # Layer 1: fused concat -> Linear(+folded BN) -> ReLU.
        # The concat is expressed as a sum of per-sensor partial matmuls.
        h = jnp.dot(x_refs[0][...].astype(jnp.bfloat16), w1_refs[0][...],
                    preferred_element_type=jnp.float32)
        for s in range(1, n_sensors):
            h = h + jnp.dot(x_refs[s][...].astype(jnp.bfloat16),
                            w1_refs[s][...],
                            preferred_element_type=jnp.float32)
        h = jnp.maximum(h + b1_ref[...], 0.0)          # f32 epilogue

        # Layer 2: Linear(+folded BN) -> ReLU.
        h = jnp.dot(h.astype(jnp.bfloat16), w2_ref[...],
                    preferred_element_type=jnp.float32)
        h = jnp.maximum(h + b2_ref[...], 0.0)

        # Output layer: Linear(128, n_class), lane-padded to a multiple of 128.
        y = jnp.dot(h.astype(jnp.bfloat16), w3_ref[...],
                    preferred_element_type=jnp.float32) + b3_ref[...]
        o_ref[...] = y.astype(o_ref.dtype)

    return kernel


def init_classifier_params(key, dim_last_layer, n_class):
    """Deterministic init matching MyNet_Main._initialize_weights_block:
    Linear weight ~ N(0, 0.01), bias = 0; BatchNorm gamma = 1, beta = 0,
    running_mean = 0, running_var = 1 (eval-mode stats)."""
    k1, k2, k3 = jax.random.split(key, 3)

    def lin(k, d_in, d_out):
        w = 0.01 * jax.random.normal(k, (d_in, d_out), dtype=jnp.float32)
        b = jnp.zeros((1, d_out), dtype=jnp.float32)
        return w, b

    w1, b1 = lin(k1, dim_last_layer, 256)
    w2, b2 = lin(k2, 256, 128)
    w3, b3 = lin(k3, 128, n_class)

    def bn(d):
        return (
            jnp.ones((1, d), jnp.float32),   # gamma
            jnp.zeros((1, d), jnp.float32),  # beta
            jnp.zeros((1, d), jnp.float32),  # running_mean
            jnp.ones((1, d), jnp.float32),   # running_var
        )

    g1, be1, m1, v1 = bn(256)
    g2, be2, m2, v2 = bn(128)

    return dict(
        w1=w1, b1=b1, g1=g1, be1=be1, m1=m1, v1=v1,
        w2=w2, b2=b2, g2=g2, be2=be2, m2=m2, v2=v2,
        w3=w3, b3=b3,
    )


def fold_classifier_params(params, sensor_feat_dims, n_class):
    """Fold eval-mode BatchNorm into the preceding Linear layers, zero-pad the
    output layer to a lane-aligned width, split W1 per sensor (fused concat),
    and cast the MXU operands to bf16. Biases stay f32."""
    s1 = params["g1"] * jax.lax.rsqrt(params["v1"] + BN_EPS)      # (1, 256)
    w1f = params["w1"] * s1                                       # (D, 256)
    b1f = (params["b1"] - params["m1"]) * s1 + params["be1"]      # (1, 256)

    s2 = params["g2"] * jax.lax.rsqrt(params["v2"] + BN_EPS)
    w2f = params["w2"] * s2
    b2f = (params["b2"] - params["m2"]) * s2 + params["be2"]

    n_pad = _round_up(n_class, LANE)
    w3p = jnp.pad(params["w3"], ((0, 0), (0, n_pad - n_class)))
    b3p = jnp.pad(params["b3"], ((0, 0), (0, n_pad - n_class)))

    w1_parts = []
    off = 0
    for d in sensor_feat_dims:
        w1_parts.append(w1f[off:off + d, :].astype(jnp.bfloat16))
        off += d

    return dict(
        w1_parts=tuple(w1_parts),
        b1=b1f,
        w2=w2f.astype(jnp.bfloat16),
        b2=b2f,
        w3=w3p.astype(jnp.bfloat16),
        b3=b3p,
        n_class=n_class,
        n_pad=n_pad,
    )


def classifier_forward(x_feats, fused, *, block_m=None):
    """Run the MyNet_Main classifier head in a single Pallas kernel.

    x_feats: list of per-sensor encoder features, each (B, feat_s) float32.
    fused:   output of fold_classifier_params.
    """
    n_sensors = len(x_feats)
    B = x_feats[0].shape[0]
    n_class = fused["n_class"]
    n_pad = fused["n_pad"]

    # Batch tile: 256 rows (fills a 256x256 MXU pass) for large batches,
    # otherwise the whole (sublane-rounded) batch in one tile.
    if block_m is None:
        block_m = 256 if B >= 256 else _round_up(max(B, 1), 8)
    b_pad = _round_up(B, block_m)
    if b_pad != B:
        x_feats = [jnp.pad(x, ((0, b_pad - B), (0, 0))) for x in x_feats]

    grid = (b_pad // block_m,)

    x_specs = [
        pl.BlockSpec((block_m, x.shape[1]), lambda i: (i, 0)) for x in x_feats
    ]
    # Weights / biases: full-array blocks with grid-invariant index maps so
    # they stay VMEM-resident across batch tiles.
    w1_specs = [
        pl.BlockSpec(w.shape, lambda i: (0, 0)) for w in fused["w1_parts"]
    ]
    const_specs = [
        pl.BlockSpec(fused["b1"].shape, lambda i: (0, 0)),
        pl.BlockSpec(fused["w2"].shape, lambda i: (0, 0)),
        pl.BlockSpec(fused["b2"].shape, lambda i: (0, 0)),
        pl.BlockSpec(fused["w3"].shape, lambda i: (0, 0)),
        pl.BlockSpec(fused["b3"].shape, lambda i: (0, 0)),
    ]

    out = pl.pallas_call(
        _make_classifier_kernel(n_sensors),
        out_shape=jax.ShapeDtypeStruct((b_pad, n_pad), jnp.float32),
        grid=grid,
        in_specs=x_specs + w1_specs + const_specs,
        out_specs=pl.BlockSpec((block_m, n_pad), lambda i: (i, 0)),
        compiler_params=pltpu.CompilerParams(
            dimension_semantics=("parallel",)),
    )(*x_feats, *fused["w1_parts"], fused["b1"], fused["w2"], fused["b2"],
      fused["w3"], fused["b3"])

    return out[:B, :n_class]


def mynet_main_forward(x_dict, sensors, fused_params):
    """MyNet_Main.forward: encode per sensor (features given), fuse, classify.

    The concat is fused into the Pallas kernel (per-sensor partial matmuls),
    so no separate concatenated tensor is materialized in HBM."""
    feats = [x_dict[s] for s in sensors]
    return classifier_forward(feats, fused_params)


if __name__ == "__main__":
    key = jax.random.PRNGKey(0)
    k_feat_a, k_feat_b, k_params = jax.random.split(key, 3)

    # Two sensors: one 2D sensor ("acc") and one video sensor ("vid_rgb"),
    # with stand-in encoder feature dims 64 and 32 -> dim_last_layer = 96.
    sensors = ["acc", "vid_rgb"]
    B = 8
    feat_dims = {"acc": 64, "vid_rgb": 32}
    n_class = 10
    dim_last_layer = sum(feat_dims.values())

    x_dict = {
        "acc": jax.random.normal(k_feat_a, (B, feat_dims["acc"]),
                                 dtype=jnp.float32),
        "vid_rgb": jax.random.normal(k_feat_b, (B, feat_dims["vid_rgb"]),
                                     dtype=jnp.float32),
    }

    raw_params = init_classifier_params(k_params, dim_last_layer, n_class)
    fused = fold_classifier_params(
        raw_params, [feat_dims[s] for s in sensors], n_class)

    y = mynet_main_forward(x_dict, sensors, fused)
    y = jax.block_until_ready(y)

    # Reference: plain-JAX eval-mode forward with un-folded parameters.
    x_fuse = jnp.concatenate([x_dict[s] for s in sensors], axis=-1)

    def ref(x, p):
        h = x @ p["w1"] + p["b1"]
        h = (h - p["m1"]) * jax.lax.rsqrt(p["v1"] + BN_EPS) * p["g1"] + p["be1"]
        h = jnp.maximum(h, 0.0)
        h = h @ p["w2"] + p["b2"]
        h = (h - p["m2"]) * jax.lax.rsqrt(p["v2"] + BN_EPS) * p["g2"] + p["be2"]
        h = jnp.maximum(h, 0.0)
        return h @ p["w3"] + p["b3"]

    y_ref = ref(x_fuse, raw_params)

    assert y.shape == (B, n_class), y.shape
    assert jnp.all(jnp.isfinite(y))
    # bf16 matmul operands -> loose absolute tolerance.
    assert jnp.max(jnp.abs(y - y_ref)) < 5e-2, float(jnp.max(jnp.abs(y - y_ref)))
    print("KERNEL_OK")
</pallas_src>

<mosaic_0001>
module attributes {stable_mosaic.version = 11 : i64} {
  func.func @kernel(%arg0: i32, %arg1: memref<8x64xf32, #tpu.memory_space<vmem>>, %arg2: memref<8x32xf32, #tpu.memory_space<vmem>>, %arg3: memref<64x256xbf16, #tpu.memory_space<vmem>>, %arg4: memref<32x256xbf16, #tpu.memory_space<vmem>>, %arg5: memref<1x256xf32, #tpu.memory_space<vmem>>, %arg6: memref<256x128xbf16, #tpu.memory_space<vmem>>, %arg7: memref<1x128xf32, #tpu.memory_space<vmem>>, %arg8: memref<128x128xbf16, #tpu.memory_space<vmem>>, %arg9: memref<1x128xf32, #tpu.memory_space<vmem>>, %arg10: memref<8x128xf32, #tpu.memory_space<vmem>>) attributes {dimension_semantics = [#tpu.dimension_semantics<parallel>], iteration_bounds = array<i64: 1>, scalar_prefetch = 0 : i64, scratch_operands = 0 : i64, tpu.core_type = #tpu.core_type<tc>, window_params = [{transform_indices = @transform_0, window_bounds = array<i64: 8, 64>}, {transform_indices = @transform_1, window_bounds = array<i64: 8, 32>}, {pipeline_mode = #tpu.pipeline_mode<synchronous>, transform_indices = @transform_2, window_bounds = array<i64: 64, 256>}, {pipeline_mode = #tpu.pipeline_mode<synchronous>, transform_indices = @transform_3, window_bounds = array<i64: 32, 256>}, {pipeline_mode = #tpu.pipeline_mode<synchronous>, transform_indices = @transform_4, window_bounds = array<i64: 1, 256>}, {pipeline_mode = #tpu.pipeline_mode<synchronous>, transform_indices = @transform_5, window_bounds = array<i64: 256, 128>}, {pipeline_mode = #tpu.pipeline_mode<synchronous>, transform_indices = @transform_6, window_bounds = array<i64: 1, 128>}, {pipeline_mode = #tpu.pipeline_mode<synchronous>, transform_indices = @transform_7, window_bounds = array<i64: 128, 128>}, {pipeline_mode = #tpu.pipeline_mode<synchronous>, transform_indices = @transform_8, window_bounds = array<i64: 1, 128>}, {transform_indices = @transform_9, window_bounds = array<i64: 8, 128>}]} {
    %c0 = arith.constant 0 : index
    %c0_0 = arith.constant 0 : index
    %0 = vector.load %arg1[%c0, %c0_0] : memref<8x64xf32, #tpu.memory_space<vmem>>, vector<8x64xf32>
    %1 = arith.truncf %0 : vector<8x64xf32> to vector<8x64xbf16>
    %c0_1 = arith.constant 0 : index
    %c0_2 = arith.constant 0 : index
    %2 = vector.load %arg3[%c0_1, %c0_2] : memref<64x256xbf16, #tpu.memory_space<vmem>>, vector<64x256xbf16>
    %cst = arith.constant dense<0.000000e+00> : vector<8x256xf32>
    %3 = tpu.matmul %1, %2, %cst {dimension_numbers = #tpu.dot_dimension_numbers<[1], [0], [0], [1], [0, 0, 1, 1], [], []>} : vector<8x64xbf16>, vector<64x256xbf16>, vector<8x256xf32> -> vector<8x256xf32>
    %c0_3 = arith.constant 0 : index
    %c0_4 = arith.constant 0 : index
    %4 = vector.load %arg2[%c0_3, %c0_4] : memref<8x32xf32, #tpu.memory_space<vmem>>, vector<8x32xf32>
    %5 = arith.truncf %4 : vector<8x32xf32> to vector<8x32xbf16>
    %c0_5 = arith.constant 0 : index
    %c0_6 = arith.constant 0 : index
    %6 = vector.load %arg4[%c0_5, %c0_6] : memref<32x256xbf16, #tpu.memory_space<vmem>>, vector<32x256xbf16>
    %cst_7 = arith.constant dense<0.000000e+00> : vector<8x256xf32>
    %7 = tpu.matmul %5, %6, %cst_7 {dimension_numbers = #tpu.dot_dimension_numbers<[1], [0], [0], [1], [0, 0, 1, 1], [], []>} : vector<8x32xbf16>, vector<32x256xbf16>, vector<8x256xf32> -> vector<8x256xf32>
    %8 = arith.addf %3, %7 : vector<8x256xf32>
    %c0_8 = arith.constant 0 : index
    %c0_9 = arith.constant 0 : index
    %9 = vector.load %arg5[%c0_8, %c0_9] : memref<1x256xf32, #tpu.memory_space<vmem>>, vector<1x256xf32>
    %10 = vector.broadcast %9 : vector<1x256xf32> to vector<8x256xf32>
    %11 = arith.addf %8, %10 : vector<8x256xf32>
    %cst_10 = arith.constant 0.000000e+00 : f32
    %12 = vector.broadcast %cst_10 : f32 to vector<8x256xf32>
    %13 = arith.maximumf %11, %12 : vector<8x256xf32>
    %14 = arith.truncf %13 : vector<8x256xf32> to vector<8x256xbf16>
    %c0_11 = arith.constant 0 : index
    %c0_12 = arith.constant 0 : index
    %15 = vector.load %arg6[%c0_11, %c0_12] : memref<256x128xbf16, #tpu.memory_space<vmem>>, vector<256x128xbf16>
    %cst_13 = arith.constant dense<0.000000e+00> : vector<8x128xf32>
    %16 = tpu.matmul %14, %15, %cst_13 {dimension_numbers = #tpu.dot_dimension_numbers<[1], [0], [0], [1], [0, 0, 1, 1], [], []>} : vector<8x256xbf16>, vector<256x128xbf16>, vector<8x128xf32> -> vector<8x128xf32>
    %c0_14 = arith.constant 0 : index
    %c0_15 = arith.constant 0 : index
    %17 = vector.load %arg7[%c0_14, %c0_15] : memref<1x128xf32, #tpu.memory_space<vmem>>, vector<1x128xf32>
    %18 = vector.broadcast %17 : vector<1x128xf32> to vector<8x128xf32>
    %19 = arith.addf %16, %18 : vector<8x128xf32>
    %cst_16 = arith.constant 0.000000e+00 : f32
    %20 = vector.broadcast %cst_16 : f32 to vector<8x128xf32>
    %21 = arith.maximumf %19, %20 : vector<8x128xf32>
    %22 = arith.truncf %21 : vector<8x128xf32> to vector<8x128xbf16>
    %c0_17 = arith.constant 0 : index
    %c0_18 = arith.constant 0 : index
    %23 = vector.load %arg8[%c0_17, %c0_18] : memref<128x128xbf16, #tpu.memory_space<vmem>>, vector<128x128xbf16>
    %cst_19 = arith.constant dense<0.000000e+00> : vector<8x128xf32>
    %24 = tpu.matmul %22, %23, %cst_19 {dimension_numbers = #tpu.dot_dimension_numbers<[1], [0], [0], [1], [0, 0, 1, 1], [], []>} : vector<8x128xbf16>, vector<128x128xbf16>, vector<8x128xf32> -> vector<8x128xf32>
    %c0_20 = arith.constant 0 : index
    %c0_21 = arith.constant 0 : index
    %25 = vector.load %arg9[%c0_20, %c0_21] : memref<1x128xf32, #tpu.memory_space<vmem>>, vector<1x128xf32>
    %26 = vector.broadcast %25 : vector<1x128xf32> to vector<8x128xf32>
    %27 = arith.addf %24, %26 : vector<8x128xf32>
    %c0_22 = arith.constant 0 : index
    %c0_23 = arith.constant 0 : index
    %28 = vector.load %arg10[%c0_22, %c0_23] : memref<8x128xf32, #tpu.memory_space<vmem>>, vector<8x128xf32>
    tpu.vector_store %arg10[%c0_22, %c0_23], %27 {strides = array<i32>} : memref<8x128xf32, #tpu.memory_space<vmem>>, vector<8x128xf32>,
    return
  }
  func.func @transform_0(%arg0: i32) -> (i32, i32) {
    %c0_i32 = arith.constant 0 : i32
    %c0_i32_0 = arith.constant 0 : i32
    return %arg0, %c0_i32 : i32, i32
  }
  func.func @transform_1(%arg0: i32) -> (i32, i32) {
    %c0_i32 = arith.constant 0 : i32
    %c0_i32_0 = arith.constant 0 : i32
    return %arg0, %c0_i32 : i32, i32
  }
  func.func @transform_2(%arg0: i32) -> (i32, i32) {
    %c0_i32 = arith.constant 0 : i32
    %c0_i32_0 = arith.constant 0 : i32
    %c0_i32_1 = arith.constant 0 : i32
    return %c0_i32, %c0_i32_0 : i32, i32
  }
  func.func @transform_3(%arg0: i32) -> (i32, i32) {
    %c0_i32 = arith.constant 0 : i32
    %c0_i32_0 = arith.constant 0 : i32
    %c0_i32_1 = arith.constant 0 : i32
    return %c0_i32, %c0_i32_0 : i32, i32
  }
  func.func @transform_4(%arg0: i32) -> (i32, i32) {
    %c0_i32 = arith.constant 0 : i32
    %c0_i32_0 = arith.constant 0 : i32
    %c0_i32_1 = arith.constant 0 : i32
    return %c0_i32, %c0_i32_0 : i32, i32
  }
  func.func @transform_5(%arg0: i32) -> (i32, i32) {
    %c0_i32 = arith.constant 0 : i32
    %c0_i32_0 = arith.constant 0 : i32
    %c0_i32_1 = arith.constant 0 : i32
    return %c0_i32, %c0_i32_0 : i32, i32
  }
  func.func @transform_6(%arg0: i32) -> (i32, i32) {
    %c0_i32 = arith.constant 0 : i32
    %c0_i32_0 = arith.constant 0 : i32
    %c0_i32_1 = arith.constant 0 : i32
    return %c0_i32, %c0_i32_0 : i32, i32
  }
  func.func @transform_7(%arg0: i32) -> (i32, i32) {
    %c0_i32 = arith.constant 0 : i32
    %c0_i32_0 = arith.constant 0 : i32
    %c0_i32_1 = arith.constant 0 : i32
    return %c0_i32, %c0_i32_0 : i32, i32
  }
  func.func @transform_8(%arg0: i32) -> (i32, i32) {
    %c0_i32 = arith.constant 0 : i32
    %c0_i32_0 = arith.constant 0 : i32
    %c0_i32_1 = arith.constant 0 : i32
    return %c0_i32, %c0_i32_0 : i32, i32
  }
  func.func @transform_9(%arg0: i32) -> (i32, i32) {
    %c0_i32 = arith.constant 0 : i32
    %c0_i32_0 = arith.constant 0 : i32
    return %arg0, %c0_i32 : i32, i32
  }
}

</mosaic_0001>

<llo_original>
// kernel: tpu_custom_call.1
$region0: #{tpu_custom_call.1}
  #allocation0 [shape = 'u32[]', space=smem, size = 0x4, offset = 0x4, fixed_abs, tag = 'smem constant byte address 0x4 - core index']
  #allocation1 [shape = 'u32[144,128]{1,0:T(1,128)}', space=vmem, size = 0x12000, scoped, tag = 'internal scratch']
  %s0 = inlined_call_operand.hbm [shape: f32[8,64], index: 0, kind: input, shape index: {}]
  %s1 = inlined_call_operand.hbm [shape: f32[8,32], index: 1, kind: input, shape index: {}]
  %s2 = inlined_call_operand.hbm [shape: bf16[64,256], index: 2, kind: input, shape index: {}]
  %s3 = inlined_call_operand.hbm [shape: bf16[32,256], index: 3, kind: input, shape index: {}]
  %s4 = inlined_call_operand.vmem [shape: f32[1,256], index: 4, kind: input, shape index: {}]
  %s5 = inlined_call_operand.hbm [shape: bf16[256,128], index: 5, kind: input, shape index: {}]
  %s6 = inlined_call_operand.vmem [shape: f32[1,128], index: 6, kind: input, shape index: {}]
  %s7 = inlined_call_operand.hbm [shape: bf16[128,128], index: 7, kind: input, shape index: {}]
  %s8 = inlined_call_operand.vmem [shape: f32[1,128], index: 8, kind: input, shape index: {}]
  %s9 = inlined_call_operand.hbm [shape: f32[8,128], index: 9, kind: output, shape index: {}]
  %s10 = sld [smem:[#allocation0]]
  $region70: #{tpu_custom_call.1} parent=0
    _
  %s12 = ssub.s32 1, %s10
  %s13 = scalar_select 0, %s12, %s10
  $region1: #{tpu_custom_call.1} parent=0
    #allocation2 [shape = 'u8[4096]{0}', space=vmem, size = 0x1000, scoped, tag = 'input window, operand 0, single buffered']
    #allocation3 [shape = 's32[1]{0}', space=sflag, size = 0x4, scoped, tag = 'scoped memory for tpu_custom_call.1']
    #allocation4 [shape = 's32[1]{0}', space=sflag, size = 0x4, scoped, tag = 'scoped memory for tpu_custom_call.1']
    #allocation5 [shape = 'u8[4096]{0}', space=vmem, size = 0x1000, scoped, tag = 'input window, operand 1, single buffered']
    #allocation6 [shape = 's32[1]{0}', space=sflag, size = 0x4, scoped, tag = 'scoped memory for tpu_custom_call.1']
    #allocation7 [shape = 'u8[32768]{0}', space=vmem, size = 0x8000, scoped, tag = 'input window, operand 2, single buffered']
    #allocation8 [shape = 'u8[16384]{0}', space=vmem, size = 0x4000, scoped, tag = 'input window, operand 3, single buffered']
    #allocation9 [shape = 's32[1]{0}', space=sflag, size = 0x4, scoped, tag = 'scoped memory for tpu_custom_call.1']
    #allocation10 [shape = 'u8[65536]{0}', space=vmem, size = 0x10000, scoped, tag = 'input window, operand 5, single buffered']
    #allocation11 [shape = 'u8[32768]{0}', space=vmem, size = 0x8000, scoped, tag = 'input window, operand 7, single buffered']
    #allocation12 [shape = 's32[1]{0}', space=sflag, size = 0x4, scoped, tag = 'scoped memory for tpu_custom_call.1']
    #allocation13 [shape = 'u8[4096]{0}', space=vmem, size = 0x1000, scoped, tag = 'output window, operand 0, single buffered']
    %14 = vsyncpa [#allocation3], 0
    %15 = vsyncpa [#allocation6], 0
    %16 = vsyncpa [#allocation9], 0
    %17 = vsyncpa [#allocation12], 0
    %18 = vsyncpa [#allocation4], 0
    // Predicated region
    $region2: #{tpu_custom_call.1} parent=1 // pred_check
      _
    $region3: #{tpu_custom_call.1} parent=1 // pred_check_branch
      %20 = sbr.rel (0) target = $region5
    $region4: #{tpu_custom_call.1} parent=1 // pred_region
      %s22 = ssub.s32 128, 128
      %23 = vsyncadd [#allocation3], %s22
      %s25 = sshll.u32 [#allocation2], 4
      %s26 = int_to_ptr.vmem [resolvable:$true] %s25
      %28 = dma.hbm_to_vmem [thread:$0]  %s0, 128, %s26, [#allocation3]
    $region5: #{tpu_custom_call.1} parent=1 // pred_fallthru
      _
    // Predicated region
    $region6: #{tpu_custom_call.1} parent=1 // pred_check
      _
    $region7: #{tpu_custom_call.1} parent=1 // pred_check_branch
      %30 = sbr.rel (0) target = $region9
    $region8: #{tpu_custom_call.1} parent=1 // pred_region
      %s32 = ssub.s32 128, 128
      %33 = vsyncadd [#allocation6], %s32
      %s35 = sshll.u32 [#allocation5], 4
      %s36 = int_to_ptr.vmem [resolvable:$true] %s35
      %38 = dma.hbm_to_vmem [thread:$0]  %s1, 128, %s36, [#allocation6]
    $region9: #{tpu_custom_call.1} parent=1 // pred_fallthru
      _
    // Predicated region
    $region10: #{tpu_custom_call.1} parent=1 // pred_check
      _
    $region11: #{tpu_custom_call.1} parent=1 // pred_check_branch
      %40 = sbr.rel (0) target = $region13
    $region12: #{tpu_custom_call.1} parent=1 // pred_region
      %s42 = ssub.s32 1024, 1024
      %43 = vsyncadd [#allocation6], %s42
      %s44 = sshll.u32 [#allocation7], 4
      %s45 = int_to_ptr.vmem [resolvable:$true] %s44
      %50 = dma.hbm_to_vmem [thread:$0]  %s2, 1024, %s45, [#allocation6], 128, 128, 8
    $region13: #{tpu_custom_call.1} parent=1 // pred_fallthru
      _
    // Predicated region
    $region14: #{tpu_custom_call.1} parent=1 // pred_check
      _
    $region15: #{tpu_custom_call.1} parent=1 // pred_check_branch
      %52 = sbr.rel (0) target = $region17
    $region16: #{tpu_custom_call.1} parent=1 // pred_region
      %s54 = ssub.s32 512, 512
      %55 = vsyncadd [#allocation9], %s54
      %s56 = sshll.u32 [#allocation8], 4
      %s57 = int_to_ptr.vmem [resolvable:$true] %s56
      %62 = dma.hbm_to_vmem [thread:$0]  %s3, 512, %s57, [#allocation9], 128, 128, 8
    $region17: #{tpu_custom_call.1} parent=1 // pred_fallthru
      _
    // Predicated region
    $region18: #{tpu_custom_call.1} parent=1 // pred_check
      _
    $region19: #{tpu_custom_call.1} parent=1 // pred_check_branch
      %64 = sbr.rel (0) target = $region21
    $region20: #{tpu_custom_call.1} parent=1 // pred_region
      _
    $region21: #{tpu_custom_call.1} parent=1 // pred_fallthru
      _
    // Predicated region
    $region22: #{tpu_custom_call.1} parent=1 // pred_check
      _
    $region23: #{tpu_custom_call.1} parent=1 // pred_check_branch
      %66 = sbr.rel (0) target = $region25
    $region24: #{tpu_custom_call.1} parent=1 // pred_region
      %s68 = ssub.s32 2048, 2048
      %69 = vsyncadd [#allocation9], %s68
      %s70 = sshll.u32 [#allocation10], 4
      %s71 = int_to_ptr.vmem [resolvable:$true] %s70
      %76 = dma.hbm_to_vmem [thread:$0]  %s5, 2048, %s71, [#allocation9], 64, 64, 4
    $region25: #{tpu_custom_call.1} parent=1 // pred_fallthru
      _
    // Predicated region
    $region26: #{tpu_custom_call.1} parent=1 // pred_check
      _
    $region27: #{tpu_custom_call.1} parent=1 // pred_check_branch
      %78 = sbr.rel (0) target = $region29
    $region28: #{tpu_custom_call.1} parent=1 // pred_region
      _
    $region29: #{tpu_custom_call.1} parent=1 // pred_fallthru
      _
    // Predicated region
    $region30: #{tpu_custom_call.1} parent=1 // pred_check
      _
    $region31: #{tpu_custom_call.1} parent=1 // pred_check_branch
      %80 = sbr.rel (0) target = $region33
    $region32: #{tpu_custom_call.1} parent=1 // pred_region
      %s82 = ssub.s32 1024, 1024
      %83 = vsyncadd [#allocation12], %s82
      %s84 = sshll.u32 [#allocation11], 4
      %s85 = int_to_ptr.vmem [resolvable:$true] %s84
      %90 = dma.hbm_to_vmem [thread:$0]  %s7, 1024, %s85, [#allocation12], 64, 64, 4
    $region33: #{tpu_custom_call.1} parent=1 // pred_fallthru
      _
    // Predicated region
    $region34: #{tpu_custom_call.1} parent=1 // pred_check
      _
    $region35: #{tpu_custom_call.1} parent=1 // pred_check_branch
      %92 = sbr.rel (0) target = $region37
    $region36: #{tpu_custom_call.1} parent=1 // pred_region
      _
    $region37: #{tpu_custom_call.1} parent=1 // pred_fallthru
      _
    // Predicated region
    $region38: #{tpu_custom_call.1} parent=1 // pred_check
      _
    $region39: #{tpu_custom_call.1} parent=1 // pred_check_branch
      %94 = sbr.rel (0) target = $region41
    $region40: #{tpu_custom_call.1} parent=1 // pred_region
      %95 = dma.done [#allocation3], 128
    $region41: #{tpu_custom_call.1} parent=1 // pred_fallthru
      _
    // Predicated region
    $region42: #{tpu_custom_call.1} parent=1 // pred_check
      _
    $region43: #{tpu_custom_call.1} parent=1 // pred_check_branch
      %97 = sbr.rel (0) target = $region45
    $region44: #{tpu_custom_call.1} parent=1 // pred_region
      %98 = dma.done [#allocation6], 128
    $region45: #{tpu_custom_call.1} parent=1 // pred_fallthru
      _
    // Predicated region
    $region46: #{tpu_custom_call.1} parent=1 // pred_check
      _
    $region47: #{tpu_custom_call.1} parent=1 // pred_check_branch
      %100 = sbr.rel (0) target = $region49
    $region48: #{tpu_custom_call.1} parent=1 // pred_region
      %101 = dma.done [#allocation6], 1024
    $region49: #{tpu_custom_call.1} parent=1 // pred_fallthru
      _
    // Predicated region
    $region50: #{tpu_custom_call.1} parent=1 // pred_check
      _
    $region51: #{tpu_custom_call.1} parent=1 // pred_check_branch
      %103 = sbr.rel (0) target = $region53
    $region52: #{tpu_custom_call.1} parent=1 // pred_region
      %104 = dma.done [#allocation9], 512
    $region53: #{tpu_custom_call.1} parent=1 // pred_fallthru
      _
    // Predicated region
    $region54: #{tpu_custom_call.1} parent=1 // pred_check
      _
    $region55: #{tpu_custom_call.1} parent=1 // pred_check_branch
      %106 = sbr.rel (0) target = $region57
    $region56: #{tpu_custom_call.1} parent=1 // pred_region
      %107 = dma.done [#allocation9], 2048
    $region57: #{tpu_custom_call.1} parent=1 // pred_fallthru
      _
    // Predicated region
    $region58: #{tpu_custom_call.1} parent=1 // pred_check
      _
    $region59: #{tpu_custom_call.1} parent=1 // pred_check_branch
      %109 = sbr.rel (0) target = $region61
    $region60: #{tpu_custom_call.1} parent=1 // pred_region
      %110 = dma.done [#allocation12], 1024
    $region61: #{tpu_custom_call.1} parent=1 // pred_fallthru
      _
    %v112 = vld [vmem:[#allocation2] sm:$0xff]
    %v113 = vpack.c.bf16 %v112, %v112
    %v114 = vld [vmem:[#allocation7] sm:$0xff]
    %v115 = vld [vmem:[#allocation7 + $0x8] sm:$0xff]
    %v116 = vld [vmem:[#allocation7 + $0x10] sm:$0xff]
    %v117 = vld [vmem:[#allocation7 + $0x18] sm:$0xff]
    %v118 = vld [vmem:[#allocation7 + $0x20] sm:$0xff]
    %v119 = vld [vmem:[#allocation7 + $0x28] sm:$0xff]
    %v120 = vld [vmem:[#allocation7 + $0x30] sm:$0xff]
    %v121 = vld [vmem:[#allocation7 + $0x38] sm:$0xff]
    %v122 = vld [vmem:[#allocation5] sm:$0xff]
    %v123 = vpack.c.bf16 %v122, %v122
    %v124 = vld [vmem:[#allocation8] sm:$0xff]
    %v125 = vld [vmem:[#allocation8 + $0x8] sm:$0xff]
    %v126 = vld [vmem:[#allocation8 + $0x10] sm:$0xff]
    %v127 = vld [vmem:[#allocation8 + $0x18] sm:$0xff]
    %v132 = vunpack.c.l.b16 %v124
    %v133 = vunpack.c.h.b16 %v124
    %v134 = vunpack.c.l.b16 %v125
    %v135 = vunpack.c.h.b16 %v125
    %v136 = vunpack.c.l.b16 %v126
    %v137 = vunpack.c.h.b16 %v126
    %v138 = vunpack.c.l.b16 %v127
    %v139 = vunpack.c.h.b16 %v127
    %v140 = vpack.c.b16 %v134, %v132
    %v141 = vpack.c.b16 %v135, %v133
    %v142 = vpack.c.b16 %v138, %v136
    %v143 = vpack.c.b16 %v139, %v137
    %vm148 = vcmask 261120
    %v150 = vsel %vm148, %v123, 0
    %152 = vmatprep.subr.bf16.mxu0 0
    %153 = vmatpush1.bf16.msra.mxu0 0
    %154 = vmatprep.subr.bf16.mxu0 0
    %155 = vmatpush1.bf16.msra.mxu0 0
    %156 = vmatprep.subr.bf16.mxu0 0
    %157 = vmatpush1.bf16.msra.mxu0 0
    %158 = vmatprep.subr.bf16.mxu0 0
    %159 = vmatpush1.bf16.msra.mxu0 0
    %160 = vmatprep.subr.bf16.mxu0 0
    %161 = vmatpush1.bf16.msra.mxu0 0
    %162 = vmatprep.subr.bf16.mxu0 0
    %163 = vmatpush1.bf16.msra.mxu0 0
    %164 = vmatprep.subr.bf16.mxu0 %v143
    %165 = vmatpush1.bf16.msra.mxu0 %v142
    %166 = vmatprep.subr.bf16.mxu0 %v141
    %167 = vmatpush1.bf16.msra.mxu0 %v140
    %168 = vmatprep.subr.bf16.mxu0 0
    %169 = vmatpush2.bf16.msra.mxu0 0
    %170 = vmatprep.subr.bf16.mxu0 0
    %171 = vmatpush2.bf16.msra.mxu0 0
    %172 = vmatprep.subr.bf16.mxu0 0
    %173 = vmatpush2.bf16.msra.mxu0 0
    %174 = vmatprep.subr.bf16.mxu0 0
    %175 = vmatpush2.bf16.msra.mxu0 0
    %176 = vmatprep.subr.bf16.mxu0 0
    %177 = vmatpush2.bf16.msra.mxu0 0
    %178 = vmatprep.subr.bf16.mxu0 0
    %179 = vmatpush2.bf16.msra.mxu0 0
    %180 = vmatprep.subr.bf16.mxu0 0
    %181 = vmatpush2.bf16.msra.mxu0 0
    %182 = vmatprep.subr.bf16.mxu0 0
    %183 = vmatpush2.bf16.msra.mxu0 0
    %184 = vmatprep.mubr.bf16.mxu0 0
    %185 = vmatmul.mubr.bf16.gmra.mxu0 %v150
    %v186 = vpop.f32.mrf.mxu0
    %v187 = vadd.f32 0.0, %v186
    %v188 = vpop.f32.mrf.mxu0
    %v189 = vadd.f32 0.0, %v188
    %v190 = vpop.f32.mrf.mxu0
    %v191 = vpop.f32.mrf.mxu0
    %192 = vdwg.mxu0
    %v201 = vunpack.c.l.b16 %v114
    %v202 = vunpack.c.h.b16 %v114
    %v203 = vunpack.c.l.b16 %v115
    %v204 = vunpack.c.h.b16 %v115
    %v205 = vunpack.c.l.b16 %v116
    %v206 = vunpack.c.h.b16 %v116
    %v207 = vunpack.c.l.b16 %v117
    %v208 = vunpack.c.h.b16 %v117
    %v209 = vunpack.c.l.b16 %v118
    %v210 = vunpack.c.h.b16 %v118
    %v211 = vunpack.c.l.b16 %v119
    %v212 = vunpack.c.h.b16 %v119
    %v213 = vunpack.c.l.b16 %v120
    %v214 = vunpack.c.h.b16 %v120
    %v215 = vunpack.c.l.b16 %v121
    %v216 = vunpack.c.h.b16 %v121
    %v217 = vpack.c.b16 %v203, %v201
    %v218 = vpack.c.b16 %v204, %v202
    %v219 = vpack.c.b16 %v207, %v205
    %v220 = vpack.c.b16 %v208, %v206
    %v221 = vpack.c.b16 %v211, %v209
    %v222 = vpack.c.b16 %v212, %v210
    %v223 = vpack.c.b16 %v215, %v213
    %v224 = vpack.c.b16 %v216, %v214
    %vm233 = vcmask 523264
    %v235 = vsel %vm233, %v113, 0
    %237 = vmatprep.subr.bf16.mxu0 0
    %238 = vmatpush1.bf16.msra.mxu0 0
    %239 = vmatprep.subr.bf16.mxu0 0
    %240 = vmatpush1.bf16.msra.mxu0 0
    %241 = vmatprep.subr.bf16.mxu0 0
    %242 = vmatpush1.bf16.msra.mxu0 0
    %243 = vmatprep.subr.bf16.mxu0 0
    %244 = vmatpush1.bf16.msra.mxu0 0
    %245 = vmatprep.subr.bf16.mxu0 %v224
    %246 = vmatpush1.bf16.msra.mxu0 %v223
    %247 = vmatprep.subr.bf16.mxu0 %v222
    %248 = vmatpush1.bf16.msra.mxu0 %v221
    %249 = vmatprep.subr.bf16.mxu0 %v220
    %250 = vmatpush1.bf16.msra.mxu0 %v219
    %251 = vmatprep.subr.bf16.mxu0 %v218
    %252 = vmatpush1.bf16.msra.mxu0 %v217
    %253 = vmatprep.subr.bf16.mxu0 0
    %254 = vmatpush2.bf16.msra.mxu0 0
    %255 = vmatprep.subr.bf16.mxu0 0
    %256 = vmatpush2.bf16.msra.mxu0 0
    %257 = vmatprep.subr.bf16.mxu0 0
    %258 = vmatpush2.bf16.msra.mxu0 0
    %259 = vmatprep.subr.bf16.mxu0 0
    %260 = vmatpush2.bf16.msra.mxu0 0
    %261 = vmatprep.subr.bf16.mxu0 0
    %262 = vmatpush2.bf16.msra.mxu0 0
    %263 = vmatprep.subr.bf16.mxu0 0
    %264 = vmatpush2.bf16.msra.mxu0 0
    %265 = vmatprep.subr.bf16.mxu0 0
    %266 = vmatpush2.bf16.msra.mxu0 0
    %267 = vmatprep.subr.bf16.mxu0 0
    %268 = vmatpush2.bf16.msra.mxu0 0
    %269 = vmatprep.mubr.bf16.mxu0 0
    %270 = vmatmul.mubr.bf16.gmra.mxu0 %v235
    %v271 = vpop.f32.mrf.mxu0
    %v272 = vadd.f32 %v187, %v271
    %v273 = vpop.f32.mrf.mxu0
    %v274 = vadd.f32 %v189, %v273
    %v275 = vpop.f32.mrf.mxu0
    %v276 = vpop.f32.mrf.mxu0
    %277 = vdwg.mxu0
    %v278 = vld [vmem:[%s4] sm:$0x3]
    %v280 = vlaneseq
    %v281 = vshrl.u32 %v280, 7
    %v282 = vsub.s32 0, %v281
    %v283 = vrot.slane %v278, %v282
    %v284 = vlaneseq
    %v285 = vshrl.u32 %v284, 7
    %v286 = vsub.s32 1, %v285
    %v287 = vrot.slane %v278, %v286
    %v290 = vadd.f32 %v272, %v283
    %v291 = vadd.f32 %v274, %v287
    %v292 = vmax.f32 %v290, 0.0
    %v293 = vmax.f32 %v291, 0.0
    %v294 = vpack.c.bf16 %v292, %v292
    %v295 = vpack.c.bf16 %v293, %v293
    %v296 = vld [vmem:[#allocation10] sm:$0xf]
    %v297 = vld [vmem:[#allocation10 + $0x4] sm:$0xf]
    %v298 = vld [vmem:[#allocation10 + $0x8] sm:$0xf]
    %v299 = vld [vmem:[#allocation10 + $0xc] sm:$0xf]
    %v300 = vld [vmem:[#allocation10 + $0x10] sm:$0xf]
    %v301 = vld [vmem:[#allocation10 + $0x14] sm:$0xf]
    %v302 = vld [vmem:[#allocation10 + $0x18] sm:$0xf]
    %v303 = vld [vmem:[#allocation10 + $0x1c] sm:$0xf]
    %v304 = vld [vmem:[#allocation10 + $0x20] sm:$0xf]
    %v305 = vld [vmem:[#allocation10 + $0x24] sm:$0xf]
    %v306 = vld [vmem:[#allocation10 + $0x28] sm:$0xf]
    %v307 = vld [vmem:[#allocation10 + $0x2c] sm:$0xf]
    %v308 = vld [vmem:[#allocation10 + $0x30] sm:$0xf]
    %v309 = vld [vmem:[#allocation10 + $0x34] sm:$0xf]
    %v310 = vld [vmem:[#allocation10 + $0x38] sm:$0xf]
    %v311 = vld [vmem:[#allocation10 + $0x3c] sm:$0xf]
    %v312 = vld [vmem:[#allocation10 + $0x40] sm:$0xf]
    %v313 = vld [vmem:[#allocation10 + $0x44] sm:$0xf]
    %v314 = vld [vmem:[#allocation10 + $0x48] sm:$0xf]
    %v315 = vld [vmem:[#allocation10 + $0x4c] sm:$0xf]
    %v316 = vld [vmem:[#allocation10 + $0x50] sm:$0xf]
    %v317 = vld [vmem:[#allocation10 + $0x54] sm:$0xf]
    %v318 = vld [vmem:[#allocation10 + $0x58] sm:$0xf]
    %v319 = vld [vmem:[#allocation10 + $0x5c] sm:$0xf]
    %v320 = vld [vmem:[#allocation10 + $0x60] sm:$0xf]
    %v321 = vld [vmem:[#allocation10 + $0x64] sm:$0xf]
    %v322 = vld [vmem:[#allocation10 + $0x68] sm:$0xf]
    %v323 = vld [vmem:[#allocation10 + $0x6c] sm:$0xf]
    %v324 = vld [vmem:[#allocation10 + $0x70] sm:$0xf]
    %v325 = vld [vmem:[#allocation10 + $0x74] sm:$0xf]
    %v326 = vld [vmem:[#allocation10 + $0x78] sm:$0xf]
    %v327 = vld [vmem:[#allocation10 + $0x7c] sm:$0xf]
    %v328 = vld [vmem:[%s6] sm:$0x1]
    %v330 = vlaneseq
    %v331 = vshrl.u32 %v330, 7
    %v332 = vsub.s32 0, %v331
    %v333 = vrot.slane %v328, %v332
    %v367 = vunpack.c.l.b16 %v296
    %v368 = vunpack.c.l.b16 %v297
    %v369 = vunpack.c.l.b16 %v298
    %v370 = vunpack.c.l.b16 %v299
    %v371 = vunpack.c.l.b16 %v300
    %v372 = vunpack.c.l.b16 %v301
    %v373 = vunpack.c.l.b16 %v302
    %v374 = vunpack.c.l.b16 %v303
    %v375 = vunpack.c.l.b16 %v304
    %v376 = vunpack.c.l.b16 %v305
    %v377 = vunpack.c.l.b16 %v306
    %v378 = vunpack.c.l.b16 %v307
    %v379 = vunpack.c.l.b16 %v308
    %v380 = vunpack.c.l.b16 %v309
    %v381 = vunpack.c.l.b16 %v310
    %v382 = vunpack.c.l.b16 %v311
    %v383 = vunpack.c.l.b16 %v312
    %v384 = vunpack.c.l.b16 %v313
    %v385 = vunpack.c.l.b16 %v314
    %v386 = vunpack.c.l.b16 %v315
    %v387 = vunpack.c.l.b16 %v316
    %v388 = vunpack.c.l.b16 %v317
    %v389 = vunpack.c.l.b16 %v318
    %v390 = vunpack.c.l.b16 %v319
    %v391 = vunpack.c.l.b16 %v320
    %v392 = vunpack.c.l.b16 %v321
    %v393 = vunpack.c.l.b16 %v322
    %v394 = vunpack.c.l.b16 %v323
    %v395 = vunpack.c.l.b16 %v324
    %v396 = vunpack.c.l.b16 %v325
    %v397 = vunpack.c.l.b16 %v326
    %v398 = vunpack.c.l.b16 %v327
    %v399 = vpack.c.b16 %v368, %v367
    %v400 = vpack.c.b16 %v370, %v369
    %v401 = vpack.c.b16 %v372, %v371
    %v402 = vpack.c.b16 %v374, %v373
    %v403 = vpack.c.b16 %v376, %v375
    %v404 = vpack.c.b16 %v378, %v377
    %v405 = vpack.c.b16 %v380, %v379
    %v406 = vpack.c.b16 %v382, %v381
    %v407 = vpack.c.b16 %v384, %v383
    %v408 = vpack.c.b16 %v386, %v385
    %v409 = vpack.c.b16 %v388, %v387
    %v410 = vpack.c.b16 %v390, %v389
    %v411 = vpack.c.b16 %v392, %v391
    %v412 = vpack.c.b16 %v394, %v393
    %v413 = vpack.c.b16 %v396, %v395
    %v414 = vpack.c.b16 %v398, %v397
    %431 = vmatprep.subr.bf16.mxu0 0
    %432 = vmatpush1.bf16.msra.mxu0 %v406
    %433 = vmatprep.subr.bf16.mxu0 0
    %434 = vmatpush1.bf16.msra.mxu0 %v405
    %435 = vmatprep.subr.bf16.mxu0 0
    %436 = vmatpush1.bf16.msra.mxu0 %v404
    %437 = vmatprep.subr.bf16.mxu0 0
    %438 = vmatpush1.bf16.msra.mxu0 %v403
    %439 = vmatprep.subr.bf16.mxu0 0
    %440 = vmatpush1.bf16.msra.mxu0 %v402
    %441 = vmatprep.subr.bf16.mxu0 0
    %442 = vmatpush1.bf16.msra.mxu0 %v401
    %443 = vmatprep.subr.bf16.mxu0 0
    %444 = vmatpush1.bf16.msra.mxu0 %v400
    %445 = vmatprep.subr.bf16.mxu0 0
    %446 = vmatpush1.bf16.msra.mxu0 %v399
    %447 = vmatprep.subr.bf16.mxu0 0
    %448 = vmatpush2.bf16.msra.mxu0 %v414
    %449 = vmatprep.subr.bf16.mxu0 0
    %450 = vmatpush2.bf16.msra.mxu0 %v413
    %451 = vmatprep.subr.bf16.mxu0 0
    %452 = vmatpush2.bf16.msra.mxu0 %v412
    %453 = vmatprep.subr.bf16.mxu0 0
    %454 = vmatpush2.bf16.msra.mxu0 %v411
    %455 = vmatprep.subr.bf16.mxu0 0
    %456 = vmatpush2.bf16.msra.mxu0 %v410
    %457 = vmatprep.subr.bf16.mxu0 0
    %458 = vmatpush2.bf16.msra.mxu0 %v409
    %459 = vmatprep.subr.bf16.mxu0 0
    %460 = vmatpush2.bf16.msra.mxu0 %v408
    %461 = vmatprep.subr.bf16.mxu0 0
    %462 = vmatpush2.bf16.msra.mxu0 %v407
    %463 = vmatprep.mubr.bf16.mxu0 %v295
    %464 = vmatmul.mubr.bf16.gmra.mxu0 %v294
    %v465 = vpop.f32.mrf.mxu0
    %v466 = vadd.f32 %v333, %v465
    %v467 = vpop.f32.mrf.mxu0
    %v468 = vpop.f32.mrf.mxu0
    %v469 = vpop.f32.mrf.mxu0
    %470 = vdwg.mxu0
    %v471 = vmax.f32 %v466, 0.0
    %v472 = vpack.c.bf16 %v471, %v471
    %v473 = vld [vmem:[#allocation11] sm:$0xf]
    %v474 = vld [vmem:[#allocation11 + $0x4] sm:$0xf]
    %v475 = vld [vmem:[#allocation11 + $0x8] sm:$0xf]
    %v476 = vld [vmem:[#allocation11 + $0xc] sm:$0xf]
    %v477 = vld [vmem:[#allocation11 + $0x10] sm:$0xf]
    %v478 = vld [vmem:[#allocation11 + $0x14] sm:$0xf]
    %v479 = vld [vmem:[#allocation11 + $0x18] sm:$0xf]
    %v480 = vld [vmem:[#allocation11 + $0x1c] sm:$0xf]
    %v481 = vld [vmem:[#allocation11 + $0x20] sm:$0xf]
    %v482 = vld [vmem:[#allocation11 + $0x24] sm:$0xf]
    %v483 = vld [vmem:[#allocation11 + $0x28] sm:$0xf]
    %v484 = vld [vmem:[#allocation11 + $0x2c] sm:$0xf]
    %v485 = vld [vmem:[#allocation11 + $0x30] sm:$0xf]
    %v486 = vld [vmem:[#allocation11 + $0x34] sm:$0xf]
    %v487 = vld [vmem:[#allocation11 + $0x38] sm:$0xf]
    %v488 = vld [vmem:[#allocation11 + $0x3c] sm:$0xf]
    %v489 = vld [vmem:[%s8] sm:$0x1]
    %v491 = vlaneseq
    %v492 = vshrl.u32 %v491, 7
    %v493 = vsub.s32 0, %v492
    %v494 = vrot.slane %v489, %v493
    %v512 = vunpack.c.l.b16 %v473
    %v513 = vunpack.c.l.b16 %v474
    %v514 = vunpack.c.l.b16 %v475
    %v515 = vunpack.c.l.b16 %v476
    %v516 = vunpack.c.l.b16 %v477
    %v517 = vunpack.c.l.b16 %v478
    %v518 = vunpack.c.l.b16 %v479
    %v519 = vunpack.c.l.b16 %v480
    %v520 = vunpack.c.l.b16 %v481
    %v521 = vunpack.c.l.b16 %v482
    %v522 = vunpack.c.l.b16 %v483
    %v523 = vunpack.c.l.b16 %v484
    %v524 = vunpack.c.l.b16 %v485
    %v525 = vunpack.c.l.b16 %v486
    %v526 = vunpack.c.l.b16 %v487
    %v527 = vunpack.c.l.b16 %v488
    %v528 = vpack.c.b16 %v513, %v512
    %v529 = vpack.c.b16 %v515, %v514
    %v530 = vpack.c.b16 %v517, %v516
    %v531 = vpack.c.b16 %v519, %v518
    %v532 = vpack.c.b16 %v521, %v520
    %v533 = vpack.c.b16 %v523, %v522
    %v534 = vpack.c.b16 %v525, %v524
    %v535 = vpack.c.b16 %v527, %v526
    %544 = vmatprep.subr.bf16.mxu0 0
    %545 = vmatpush1.bf16.msra.mxu0 %v535
    %546 = vmatprep.subr.bf16.mxu0 0
    %547 = vmatpush1.bf16.msra.mxu0 %v534
    %548 = vmatprep.subr.bf16.mxu0 0
    %549 = vmatpush1.bf16.msra.mxu0 %v533
    %550 = vmatprep.subr.bf16.mxu0 0
    %551 = vmatpush1.bf16.msra.mxu0 %v532
    %552 = vmatprep.subr.bf16.mxu0 0
    %553 = vmatpush1.bf16.msra.mxu0 %v531
    %554 = vmatprep.subr.bf16.mxu0 0
    %555 = vmatpush1.bf16.msra.mxu0 %v530
    %556 = vmatprep.subr.bf16.mxu0 0
    %557 = vmatpush1.bf16.msra.mxu0 %v529
    %558 = vmatprep.subr.bf16.mxu0 0
    %559 = vmatpush1.bf16.msra.mxu0 %v528
    %560 = vmatprep.subr.bf16.mxu0 0
    %561 = vmatpush2.bf16.msra.mxu0 0
    %562 = vmatprep.subr.bf16.mxu0 0
    %563 = vmatpush2.bf16.msra.mxu0 0
    %564 = vmatprep.subr.bf16.mxu0 0
    %565 = vmatpush2.bf16.msra.mxu0 0
    %566 = vmatprep.subr.bf16.mxu0 0
    %567 = vmatpush2.bf16.msra.mxu0 0
    %568 = vmatprep.subr.bf16.mxu0 0
    %569 = vmatpush2.bf16.msra.mxu0 0
    %570 = vmatprep.subr.bf16.mxu0 0
    %571 = vmatpush2.bf16.msra.mxu0 0
    %572 = vmatprep.subr.bf16.mxu0 0
    %573 = vmatpush2.bf16.msra.mxu0 0
    %574 = vmatprep.subr.bf16.mxu0 0
    %575 = vmatpush2.bf16.msra.mxu0 0
    %576 = vmatprep.mubr.bf16.mxu0 0
    %577 = vmatmul.mubr.bf16.gmra.mxu0 %v472
    %v578 = vpop.f32.mrf.mxu0
    %v579 = vadd.f32 %v494, %v578
    %v580 = vpop.f32.mrf.mxu0
    %v581 = vpop.f32.mrf.mxu0
    %v582 = vpop.f32.mrf.mxu0
    %583 = vdwg.mxu0
    %584 = vst [vmem:[#allocation13] sm:$0xff] %v579
    // Predicated region
    $region62: #{tpu_custom_call.1} parent=1 // pred_check
      _
    $region63: #{tpu_custom_call.1} parent=1 // pred_check_branch
      %586 = sbr.rel (0) target = $region65
    $region64: #{tpu_custom_call.1} parent=1 // pred_region
      %s588 = ssub.s32 128, 128
      %589 = vsyncadd [#allocation4], %s588
      %s591 = sshll.u32 [#allocation13], 4
      %s592 = int_to_ptr.vmem [resolvable:$true] %s591
      %594 = dma.vmem_to_hbm [thread:$0]  %s592, 128, %s9, [#allocation4]
    $region65: #{tpu_custom_call.1} parent=1 // pred_fallthru
      _
    // Predicated region
    $region66: #{tpu_custom_call.1} parent=1 // pred_check
      _
    $region67: #{tpu_custom_call.1} parent=1 // pred_check_branch
      %596 = sbr.rel (0) target = $region69
    $region68: #{tpu_custom_call.1} parent=1 // pred_region
      %597 = dma.done [#allocation4], 128
    $region69: #{tpu_custom_call.1} parent=1 // pred_fallthru
      _
    %598 = vsyncpa [#allocation3], 1
    %599 = vsyncpa [#allocation6], 1
    %600 = vsyncpa [#allocation9], 1
    %601 = vsyncpa [#allocation12], 1
    %602 = vsyncpa [#allocation4], 1

</llo_original>
